<compile_context>
chip_gen: v5e
topology: v5e:2x2
jax: 0.10.0
libtpu: 0.0.40
codegen_flags: <defaults>
</compile_context>

<pallas_src>
import jax
import jax.numpy as jnp
from jax.experimental import pallas as pl
from jax.experimental.pallas import tpu as pltpu


def _round_up(x, m):
    return (x + m - 1) // m * m


def _scaled_coupling_kernel(factors_ref,                     # SMEM: [x1_factor, x2_factor]
                            x1_ref, x2_ref,
                            w1f_ref, b1f_ref, w2f_ref, b2f_ref,
                            w1g_ref, b1g_ref, w2g_ref, b2g_ref,
                            y1_ref, y2_ref):
    """One row-tile of the scaled coupling block, fully fused in VMEM.

    x1_ref/x2_ref : (tile_rows, D)  f32 activations
    F-MLP         : w1f (D, H), b1f (1, H), w2f (H, D), b2f (1, D)
    G-MLP         : same shapes as F.  Weights may be bf16 (default) or f32
                    MXU operands; biases / GELU / accumulation stay f32.
    y1_ref/y2_ref : (tile_rows, D)
    """
    x1f = factors_ref[0]
    x2f = factors_ref[1]
    x1 = x1_ref[...]
    x2 = x2_ref[...]
    wdt = w1f_ref.dtype  # MXU operand dtype (bf16 by default, optionally f32)

    # F(x2): Linear -> GELU -> Linear, f32 accumulation on the MXU.
    h = jnp.dot(x2.astype(wdt), w1f_ref[...],
                preferred_element_type=jnp.float32) + b1f_ref[...]
    h = jax.nn.gelu(h, approximate=True)                  # f32 on VPU/EUP
    f_x2 = jnp.dot(h.astype(wdt), w2f_ref[...],
                   preferred_element_type=jnp.float32) + b2f_ref[...]
    y1 = x1f * x1 + f_x2

    # G(y1): Linear -> GELU -> Linear.
    h = jnp.dot(y1.astype(wdt), w1g_ref[...],
                preferred_element_type=jnp.float32) + b1g_ref[...]
    h = jax.nn.gelu(h, approximate=True)
    g_y1 = jnp.dot(h.astype(wdt), w2g_ref[...],
                   preferred_element_type=jnp.float32) + b2g_ref[...]
    y2 = x2f * x2 + g_y1

    # Direct full-tile, lane-dense stores (no concatenate, no slicing).
    y1_ref[...] = y1.astype(y1_ref.dtype)
    y2_ref[...] = y2.astype(y2_ref.dtype)


def scaled_coupling_block(x1, x2, params, *,
                          x1_factor=1.0, x2_factor=1.0, switch=False,
                          tile_rows=2048, mxu_dtype=jnp.bfloat16,
                          vmem_limit_bytes=32 * 1024 * 1024):
    """Forward pass of ScaledCouplingBlock.

    x1, x2 : (B, S, D) -> returns (y1, y2) each (B, S, D).
    params : dict with F/G MLP weights (w1f,b1f,w2f,b2f,w1g,b1g,w2g,b2g).
    mxu_dtype : dtype for MXU operands (bf16 default; f32 for exact block_dtype).
    """
    assert x1.shape == x2.shape
    lead, D = x1.shape[:-1], x1.shape[-1]
    rows = 1
    for s in lead:
        rows *= s

    x1_2d = x1.reshape(rows, D)
    x2_2d = x2.reshape(rows, D)

    # --- tile-size selection ----------------------------------------------
    # Multiple of 8 sublanes.
    tile_rows = _round_up(max(int(tile_rows), 8), 8)
    # (a) keep double-buffered streamed I/O (4 arrays x 2 buffers) within ~60%
    #     of the scoped VMEM budget (v7x only has 64 MiB physical VMEM).
    bytes_per_row = D * jnp.dtype(x1.dtype).itemsize
    max_rows_by_vmem = max(8, ((int(0.6 * vmem_limit_bytes) //
                                (8 * bytes_per_row)) // 8) * 8)
    tile_rows = min(tile_rows, max_rows_by_vmem)
    # (b) keep the parallel row grid >= 2 steps when possible so 2-TC chips
    #     (v7x) / megacore sharding have work to split.
    two_step_cap = _round_up(pl.cdiv(rows, 2), 8)
    tile_rows = max(8, min(tile_rows, two_step_cap))

    grid = (pl.cdiv(rows, tile_rows),)   # ragged last block handled by Pallas

    # MXU operands: cast weights once in the wrapper (halves their DMA bytes in
    # bf16); biases stay f32 so accumulation / residual math is exact f32.
    w1f = params["w1f"].astype(mxu_dtype)
    w2f = params["w2f"].astype(mxu_dtype)
    w1g = params["w1g"].astype(mxu_dtype)
    w2g = params["w2g"].astype(mxu_dtype)
    b1f, b2f = params["b1f"], params["b2f"]
    b1g, b2g = params["b1g"], params["b2g"]
    hidden = w1f.shape[1]

    # Runtime scalars (no recompile per factor value; traced values OK).
    factors = jnp.asarray([x1_factor, x2_factor], dtype=jnp.float32)

    # Weights/biases are small (<1 MiB in bf16): single full-array VMEM blocks
    # with constant index_maps (DMA'd once, revisits skipped by Pallas).
    wspec = lambda shape: pl.BlockSpec(shape, lambda i, fac: (0, 0))
    row_spec = pl.BlockSpec((tile_rows, D), lambda i, fac: (i, 0))

    y1_2d, y2_2d = pl.pallas_call(
        _scaled_coupling_kernel,
        out_shape=(jax.ShapeDtypeStruct((rows, D), x1.dtype),
                   jax.ShapeDtypeStruct((rows, D), x2.dtype)),
        grid_spec=pltpu.PrefetchScalarGridSpec(
            num_scalar_prefetch=1,                       # factors -> SMEM
            grid=grid,
            in_specs=[
                row_spec, row_spec,                      # x1, x2 row tiles
                wspec((D, hidden)), wspec((1, hidden)),  # F layer 1
                wspec((hidden, D)), wspec((1, D)),       # F layer 2
                wspec((D, hidden)), wspec((1, hidden)),  # G layer 1
                wspec((hidden, D)), wspec((1, D)),       # G layer 2
            ],
            out_specs=[row_spec, row_spec],
        ),
        compiler_params=pltpu.CompilerParams(
            dimension_semantics=("parallel",),           # megacore-shardable
            vmem_limit_bytes=vmem_limit_bytes,
        ),
    )(factors, x1_2d, x2_2d, w1f, b1f, w2f, b2f, w1g, b1g, w2g, b2g)

    y1 = y1_2d.reshape(*lead, D)
    y2 = y2_2d.reshape(*lead, D)
    if switch:
        y1, y2 = y2, y1
    return y1, y2


def scaled_coupling_block_ref(x1, x2, params, *,
                              x1_factor=1.0, x2_factor=1.0, switch=False):
    """Pure-JAX reference matching the PyTorch forward semantics
    (F/G instantiated as Linear -> GELU(tanh) -> Linear MLPs)."""
    def mlp(v, w1, b1, w2, b2):
        return jax.nn.gelu(v @ w1 + b1, approximate=True) @ w2 + b2

    y1 = x1_factor * x1 + mlp(x2, params["w1f"], params["b1f"],
                              params["w2f"], params["b2f"])
    y2 = x2_factor * x2 + mlp(y1, params["w1g"], params["b1g"],
                              params["w2g"], params["b2g"])
    if switch:
        y1, y2 = y2, y1
    return y1, y2


if __name__ == "__main__":
    # Small shapes consistent with the module: x1, x2 are (B, S, D).
    # S=9 -> rows=18 deliberately exercises the ragged-last-block path
    # (no pad / no output slicing).
    B, S, D, HIDDEN = 2, 9, 128, 128
    X1_FACTOR, X2_FACTOR, SWITCH = 0.9, 1.1, True

    key = jax.random.PRNGKey(0)
    kx1, kx2, k1, k2, k3, k4, k5, k6, k7, k8 = jax.random.split(key, 10)

    x1 = jax.random.normal(kx1, (B, S, D), dtype=jnp.float32)
    x2 = jax.random.normal(kx2, (B, S, D), dtype=jnp.float32)

    scale = 0.02
    params = {
        "w1f": scale * jax.random.normal(k1, (D, HIDDEN), jnp.float32),
        "b1f": scale * jax.random.normal(k2, (1, HIDDEN), jnp.float32),
        "w2f": scale * jax.random.normal(k3, (HIDDEN, D), jnp.float32),
        "b2f": scale * jax.random.normal(k4, (1, D), jnp.float32),
        "w1g": scale * jax.random.normal(k5, (D, HIDDEN), jnp.float32),
        "b1g": scale * jax.random.normal(k6, (1, HIDDEN), jnp.float32),
        "w2g": scale * jax.random.normal(k7, (HIDDEN, D), jnp.float32),
        "b2g": scale * jax.random.normal(k8, (1, D), jnp.float32),
    }

    y_ref = scaled_coupling_block_ref(x1, x2, params, x1_factor=X1_FACTOR,
                                      x2_factor=X2_FACTOR, switch=SWITCH)
    y_ref = jax.block_until_ready(y_ref)

    # Exact f32 MXU-operand path (matches block_dtype=torch.float32 closely).
    y1, y2 = jax.block_until_ready(
        scaled_coupling_block(x1, x2, params, x1_factor=X1_FACTOR,
                              x2_factor=X2_FACTOR, switch=SWITCH,
                              mxu_dtype=jnp.float32))
    assert y1.shape == x1.shape and y2.shape == x2.shape
    assert y1.dtype == x1.dtype and y2.dtype == x2.dtype
    assert jnp.allclose(y1, y_ref[0], atol=1e-5, rtol=1e-5), \
        f"y1 max err {jnp.max(jnp.abs(y1 - y_ref[0]))}"
    assert jnp.allclose(y2, y_ref[1], atol=1e-5, rtol=1e-5), \
        f"y2 max err {jnp.max(jnp.abs(y2 - y_ref[1]))}"

    # Default path: bf16 MXU operands, f32 accumulation — looser tolerance.
    y1b, y2b = jax.block_until_ready(
        scaled_coupling_block(x1, x2, params, x1_factor=X1_FACTOR,
                              x2_factor=X2_FACTOR, switch=SWITCH))
    assert jnp.allclose(y1b, y_ref[0], atol=5e-2, rtol=5e-2), \
        f"y1(bf16) max err {jnp.max(jnp.abs(y1b - y_ref[0]))}"
    assert jnp.allclose(y2b, y_ref[1], atol=5e-2, rtol=5e-2), \
        f"y2(bf16) max err {jnp.max(jnp.abs(y2b - y_ref[1]))}"

    # TODO(synk): the custom autograd (ScaledInvertibleCouplingLayer.backward —
    # memory-free reversible recomputation, output_hooks, fix_random_seed RNG
    # replay) is training-time machinery with no forward-pass Pallas equivalent;
    # only the forward math is kernelized.
    print("KERNEL_OK")
</pallas_src>

<mosaic_0001>
module attributes {stable_mosaic.version = 11 : i64} {
  func.func @_scaled_coupling_kernel(%arg0: i32, %arg1: memref<2xf32, #tpu.memory_space<smem>>, %arg2: memref<16x128xf32, #tpu.memory_space<vmem>>, %arg3: memref<16x128xf32, #tpu.memory_space<vmem>>, %arg4: memref<128x128xf32, #tpu.memory_space<vmem>>, %arg5: memref<1x128xf32, #tpu.memory_space<vmem>>, %arg6: memref<128x128xf32, #tpu.memory_space<vmem>>, %arg7: memref<1x128xf32, #tpu.memory_space<vmem>>, %arg8: memref<128x128xf32, #tpu.memory_space<vmem>>, %arg9: memref<1x128xf32, #tpu.memory_space<vmem>>, %arg10: memref<128x128xf32, #tpu.memory_space<vmem>>, %arg11: memref<1x128xf32, #tpu.memory_space<vmem>>, %arg12: memref<16x128xf32, #tpu.memory_space<vmem>>, %arg13: memref<16x128xf32, #tpu.memory_space<vmem>>) attributes {dimension_semantics = [#tpu.dimension_semantics<parallel>], iteration_bounds = array<i64: 2>, scalar_prefetch = 1 : i64, scratch_operands = 0 : i64, tpu.core_type = #tpu.core_type<tc>, window_params = [{transform_indices = @transform_0, window_bounds = array<i64: 16, 128>}, {transform_indices = @transform_1, window_bounds = array<i64: 16, 128>}, {pipeline_mode = #tpu.pipeline_mode<synchronous>, transform_indices = @transform_2, window_bounds = array<i64: 128, 128>}, {pipeline_mode = #tpu.pipeline_mode<synchronous>, transform_indices = @transform_3, window_bounds = array<i64: 1, 128>}, {pipeline_mode = #tpu.pipeline_mode<synchronous>, transform_indices = @transform_4, window_bounds = array<i64: 128, 128>}, {pipeline_mode = #tpu.pipeline_mode<synchronous>, transform_indices = @transform_5, window_bounds = array<i64: 1, 128>}, {pipeline_mode = #tpu.pipeline_mode<synchronous>, transform_indices = @transform_6, window_bounds = array<i64: 128, 128>}, {pipeline_mode = #tpu.pipeline_mode<synchronous>, transform_indices = @transform_7, window_bounds = array<i64: 1, 128>}, {pipeline_mode = #tpu.pipeline_mode<synchronous>, transform_indices = @transform_8, window_bounds = array<i64: 128, 128>}, {pipeline_mode = #tpu.pipeline_mode<synchronous>, transform_indices = @transform_9, window_bounds = array<i64: 1, 128>}, {transform_indices = @transform_10, window_bounds = array<i64: 16, 128>}, {transform_indices = @transform_11, window_bounds = array<i64: 16, 128>}]} {
    %c0 = arith.constant 0 : index
    %0 = memref.load %arg1[%c0] : memref<2xf32, #tpu.memory_space<smem>>
    %c1 = arith.constant 1 : index
    %1 = memref.load %arg1[%c1] : memref<2xf32, #tpu.memory_space<smem>>
    %c0_0 = arith.constant 0 : index
    %c0_1 = arith.constant 0 : index
    %2 = vector.load %arg2[%c0_0, %c0_1] : memref<16x128xf32, #tpu.memory_space<vmem>>, vector<16x128xf32>
    %c0_2 = arith.constant 0 : index
    %c0_3 = arith.constant 0 : index
    %3 = vector.load %arg3[%c0_2, %c0_3] : memref<16x128xf32, #tpu.memory_space<vmem>>, vector<16x128xf32>
    %c0_4 = arith.constant 0 : index
    %c0_5 = arith.constant 0 : index
    %4 = vector.load %arg4[%c0_4, %c0_5] : memref<128x128xf32, #tpu.memory_space<vmem>>, vector<128x128xf32>
    %cst = arith.constant dense<0.000000e+00> : vector<16x128xf32>
    %5 = tpu.matmul %3, %4, %cst {dimension_numbers = #tpu.dot_dimension_numbers<[1], [0], [0], [1], [0, 0, 1, 1], [], []>} : vector<16x128xf32>, vector<128x128xf32>, vector<16x128xf32> -> vector<16x128xf32>
    %c0_6 = arith.constant 0 : index
    %c0_7 = arith.constant 0 : index
    %6 = vector.load %arg5[%c0_6, %c0_7] : memref<1x128xf32, #tpu.memory_space<vmem>>, vector<1x128xf32>
    %7 = vector.broadcast %6 : vector<1x128xf32> to vector<16x128xf32>
    %8 = arith.addf %5, %7 : vector<16x128xf32>
    %9 = arith.mulf %8, %8 : vector<16x128xf32>
    %10 = arith.mulf %8, %9 : vector<16x128xf32>
    %cst_8 = arith.constant 4.471500e-02 : f32
    %11 = vector.broadcast %cst_8 : f32 to vector<16x128xf32>
    %12 = arith.mulf %11, %10 : vector<16x128xf32>
    %13 = arith.addf %8, %12 : vector<16x128xf32>
    %cst_9 = arith.constant 0.797884583 : f32
    %14 = vector.broadcast %cst_9 : f32 to vector<16x128xf32>
    %15 = arith.mulf %14, %13 : vector<16x128xf32>
    %16 = math.tanh %15 : vector<16x128xf32>
    %cst_10 = arith.constant 1.000000e+00 : f32
    %17 = vector.broadcast %cst_10 : f32 to vector<16x128xf32>
    %18 = arith.addf %17, %16 : vector<16x128xf32>
    %cst_11 = arith.constant 5.000000e-01 : f32
    %19 = vector.broadcast %cst_11 : f32 to vector<16x128xf32>
    %20 = arith.mulf %19, %18 : vector<16x128xf32>
    %21 = arith.mulf %8, %20 : vector<16x128xf32>
    %c0_12 = arith.constant 0 : index
    %c0_13 = arith.constant 0 : index
    %22 = vector.load %arg6[%c0_12, %c0_13] : memref<128x128xf32, #tpu.memory_space<vmem>>, vector<128x128xf32>
    %cst_14 = arith.constant dense<0.000000e+00> : vector<16x128xf32>
    %23 = tpu.matmul %21, %22, %cst_14 {dimension_numbers = #tpu.dot_dimension_numbers<[1], [0], [0], [1], [0, 0, 1, 1], [], []>} : vector<16x128xf32>, vector<128x128xf32>, vector<16x128xf32> -> vector<16x128xf32>
    %c0_15 = arith.constant 0 : index
    %c0_16 = arith.constant 0 : index
    %24 = vector.load %arg7[%c0_15, %c0_16] : memref<1x128xf32, #tpu.memory_space<vmem>>, vector<1x128xf32>
    %25 = vector.broadcast %24 : vector<1x128xf32> to vector<16x128xf32>
    %26 = arith.addf %23, %25 : vector<16x128xf32>
    %27 = vector.broadcast %0 : f32 to vector<16x128xf32>
    %28 = arith.mulf %27, %2 : vector<16x128xf32>
    %29 = arith.addf %28, %26 : vector<16x128xf32>
    %c0_17 = arith.constant 0 : index
    %c0_18 = arith.constant 0 : index
    %30 = vector.load %arg8[%c0_17, %c0_18] : memref<128x128xf32, #tpu.memory_space<vmem>>, vector<128x128xf32>
    %cst_19 = arith.constant dense<0.000000e+00> : vector<16x128xf32>
    %31 = tpu.matmul %29, %30, %cst_19 {dimension_numbers = #tpu.dot_dimension_numbers<[1], [0], [0], [1], [0, 0, 1, 1], [], []>} : vector<16x128xf32>, vector<128x128xf32>, vector<16x128xf32> -> vector<16x128xf32>
    %c0_20 = arith.constant 0 : index
    %c0_21 = arith.constant 0 : index
    %32 = vector.load %arg9[%c0_20, %c0_21] : memref<1x128xf32, #tpu.memory_space<vmem>>, vector<1x128xf32>
    %33 = vector.broadcast %32 : vector<1x128xf32> to vector<16x128xf32>
    %34 = arith.addf %31, %33 : vector<16x128xf32>
    %35 = arith.mulf %34, %34 : vector<16x128xf32>
    %36 = arith.mulf %34, %35 : vector<16x128xf32>
    %cst_22 = arith.constant 4.471500e-02 : f32
    %37 = vector.broadcast %cst_22 : f32 to vector<16x128xf32>
    %38 = arith.mulf %37, %36 : vector<16x128xf32>
    %39 = arith.addf %34, %38 : vector<16x128xf32>
    %cst_23 = arith.constant 0.797884583 : f32
    %40 = vector.broadcast %cst_23 : f32 to vector<16x128xf32>
    %41 = arith.mulf %40, %39 : vector<16x128xf32>
    %42 = math.tanh %41 : vector<16x128xf32>
    %cst_24 = arith.constant 1.000000e+00 : f32
    %43 = vector.broadcast %cst_24 : f32 to vector<16x128xf32>
    %44 = arith.addf %43, %42 : vector<16x128xf32>
    %cst_25 = arith.constant 5.000000e-01 : f32
    %45 = vector.broadcast %cst_25 : f32 to vector<16x128xf32>
    %46 = arith.mulf %45, %44 : vector<16x128xf32>
    %47 = arith.mulf %34, %46 : vector<16x128xf32>
    %c0_26 = arith.constant 0 : index
    %c0_27 = arith.constant 0 : index
    %48 = vector.load %arg10[%c0_26, %c0_27] : memref<128x128xf32, #tpu.memory_space<vmem>>, vector<128x128xf32>
    %cst_28 = arith.constant dense<0.000000e+00> : vector<16x128xf32>
    %49 = tpu.matmul %47, %48, %cst_28 {dimension_numbers = #tpu.dot_dimension_numbers<[1], [0], [0], [1], [0, 0, 1, 1], [], []>} : vector<16x128xf32>, vector<128x128xf32>, vector<16x128xf32> -> vector<16x128xf32>
    %c0_29 = arith.constant 0 : index
    %c0_30 = arith.constant 0 : index
    %50 = vector.load %arg11[%c0_29, %c0_30] : memref<1x128xf32, #tpu.memory_space<vmem>>, vector<1x128xf32>
    %51 = vector.broadcast %50 : vector<1x128xf32> to vector<16x128xf32>
    %52 = arith.addf %49, %51 : vector<16x128xf32>
    %53 = vector.broadcast %1 : f32 to vector<16x128xf32>
    %54 = arith.mulf %53, %3 : vector<16x128xf32>
    %55 = arith.addf %54, %52 : vector<16x128xf32>
    %c0_31 = arith.constant 0 : index
    %c0_32 = arith.constant 0 : index
    %56 = vector.load %arg12[%c0_31, %c0_32] : memref<16x128xf32, #tpu.memory_space<vmem>>, vector<16x128xf32>
    tpu.vector_store %arg12[%c0_31, %c0_32], %29 {strides = array<i32>} : memref<16x128xf32, #tpu.memory_space<vmem>>, vector<16x128xf32>,
    %c0_33 = arith.constant 0 : index
    %c0_34 = arith.constant 0 : index
    %57 = vector.load %arg13[%c0_33, %c0_34] : memref<16x128xf32, #tpu.memory_space<vmem>>, vector<16x128xf32>
    tpu.vector_store %arg13[%c0_33, %c0_34], %55 {strides = array<i32>} : memref<16x128xf32, #tpu.memory_space<vmem>>, vector<16x128xf32>,
    return
  }
  func.func @transform_0(%arg0: i32, %arg1: memref<2xf32, #tpu.memory_space<smem>>) -> (i32, i32) {
    %c0_i32 = arith.constant 0 : i32
    %c0_i32_0 = arith.constant 0 : i32
    return %arg0, %c0_i32 : i32, i32
  }
  func.func @transform_1(%arg0: i32, %arg1: memref<2xf32, #tpu.memory_space<smem>>) -> (i32, i32) {
    %c0_i32 = arith.constant 0 : i32
    %c0_i32_0 = arith.constant 0 : i32
    return %arg0, %c0_i32 : i32, i32
  }
  func.func @transform_2(%arg0: i32, %arg1: memref<2xf32, #tpu.memory_space<smem>>) -> (i32, i32) {
    %c0_i32 = arith.constant 0 : i32
    %c0_i32_0 = arith.constant 0 : i32
    %c0_i32_1 = arith.constant 0 : i32
    return %c0_i32, %c0_i32_0 : i32, i32
  }
  func.func @transform_3(%arg0: i32, %arg1: memref<2xf32, #tpu.memory_space<smem>>) -> (i32, i32) {
    %c0_i32 = arith.constant 0 : i32
    %c0_i32_0 = arith.constant 0 : i32
    %c0_i32_1 = arith.constant 0 : i32
    return %c0_i32, %c0_i32_0 : i32, i32
  }
  func.func @transform_4(%arg0: i32, %arg1: memref<2xf32, #tpu.memory_space<smem>>) -> (i32, i32) {
    %c0_i32 = arith.constant 0 : i32
    %c0_i32_0 = arith.constant 0 : i32
    %c0_i32_1 = arith.constant 0 : i32
    return %c0_i32, %c0_i32_0 : i32, i32
  }
  func.func @transform_5(%arg0: i32, %arg1: memref<2xf32, #tpu.memory_space<smem>>) -> (i32, i32) {
    %c0_i32 = arith.constant 0 : i32
    %c0_i32_0 = arith.constant 0 : i32
    %c0_i32_1 = arith.constant 0 : i32
    return %c0_i32, %c0_i32_0 : i32, i32
  }
  func.func @transform_6(%arg0: i32, %arg1: memref<2xf32, #tpu.memory_space<smem>>) -> (i32, i32) {
    %c0_i32 = arith.constant 0 : i32
    %c0_i32_0 = arith.constant 0 : i32
    %c0_i32_1 = arith.constant 0 : i32
    return %c0_i32, %c0_i32_0 : i32, i32
  }
  func.func @transform_7(%arg0: i32, %arg1: memref<2xf32, #tpu.memory_space<smem>>) -> (i32, i32) {
    %c0_i32 = arith.constant 0 : i32
    %c0_i32_0 = arith.constant 0 : i32
    %c0_i32_1 = arith.constant 0 : i32
    return %c0_i32, %c0_i32_0 : i32, i32
  }
  func.func @transform_8(%arg0: i32, %arg1: memref<2xf32, #tpu.memory_space<smem>>) -> (i32, i32) {
    %c0_i32 = arith.constant 0 : i32
    %c0_i32_0 = arith.constant 0 : i32
    %c0_i32_1 = arith.constant 0 : i32
    return %c0_i32, %c0_i32_0 : i32, i32
  }
  func.func @transform_9(%arg0: i32, %arg1: memref<2xf32, #tpu.memory_space<smem>>) -> (i32, i32) {
    %c0_i32 = arith.constant 0 : i32
    %c0_i32_0 = arith.constant 0 : i32
    %c0_i32_1 = arith.constant 0 : i32
    return %c0_i32, %c0_i32_0 : i32, i32
  }
  func.func @transform_10(%arg0: i32, %arg1: memref<2xf32, #tpu.memory_space<smem>>) -> (i32, i32) {
    %c0_i32 = arith.constant 0 : i32
    %c0_i32_0 = arith.constant 0 : i32
    return %arg0, %c0_i32 : i32, i32
  }
  func.func @transform_11(%arg0: i32, %arg1: memref<2xf32, #tpu.memory_space<smem>>) -> (i32, i32) {
    %c0_i32 = arith.constant 0 : i32
    %c0_i32_0 = arith.constant 0 : i32
    return %arg0, %c0_i32 : i32, i32
  }
}

</mosaic_0001>

<llo_original>
// kernel: tpu_custom_call.1
$region0: #{tpu_custom_call.1}
  #allocation0 [shape = 'u32[]', space=smem, size = 0x4, offset = 0x4, fixed_abs, tag = 'smem constant byte address 0x4 - core index']
  #allocation1 [shape = 'u32[72,128]{1,0:T(1,128)}', space=vmem, size = 0x9000, scoped, tag = 'internal scratch']
  #allocation2 [shape = 's32[1]{0}', space=sflag, size = 0x4, scoped, tag = 'scoped memory for tpu_custom_call.1']
  #allocation3 [shape = 'u8[512]{0}', space=smem, size = 0x200, scoped, tag = 'prefetched SMEM operand 0']
  %s0 = inlined_call_operand.hbm [shape: f32[2], index: 0, kind: input, shape index: {}]
  %s1 = inlined_call_operand.hbm [shape: f32[18,128], index: 1, kind: input, shape index: {}]
  %s2 = inlined_call_operand.hbm [shape: f32[18,128], index: 2, kind: input, shape index: {}]
  %s3 = inlined_call_operand.hbm [shape: f32[128,128], index: 3, kind: input, shape index: {}]
  %s4 = inlined_call_operand.vmem [shape: f32[1,128], index: 4, kind: input, shape index: {}]
  %s5 = inlined_call_operand.hbm [shape: f32[128,128], index: 5, kind: input, shape index: {}]
  %s6 = inlined_call_operand.vmem [shape: f32[1,128], index: 6, kind: input, shape index: {}]
  %s7 = inlined_call_operand.hbm [shape: f32[128,128], index: 7, kind: input, shape index: {}]
  %s8 = inlined_call_operand.vmem [shape: f32[1,128], index: 8, kind: input, shape index: {}]
  %s9 = inlined_call_operand.hbm [shape: f32[128,128], index: 9, kind: input, shape index: {}]
  %s10 = inlined_call_operand.vmem [shape: f32[1,128], index: 10, kind: input, shape index: {}]
  %s11 = inlined_call_operand.hbm [shape: f32[18,128], index: 11, kind: output, shape index: {0}]
  %s12 = inlined_call_operand.hbm [shape: f32[18,128], index: 12, kind: output, shape index: {1}]
  %13 = xla_tuple %s11, %s12
  %s14 = sld [smem:[#allocation0]]
  $region105: #{tpu_custom_call.1} parent=0
    _
  %s16 = ssub.s32 1, %s14
  %s17 = scalar_select 0, %s16, %s14
  %s19 = sshll.u32 %s0, 4
  %s20 = int_to_ptr.hbm [resolvable:$true] %s19
  %22 = dma.hbm_to_smem %s20, 16, [#allocation3], [#allocation2]
  %24 = dma.done [#allocation2], 16
  %25 = sfence
  $region1: #{tpu_custom_call.1} parent=0
    #allocation4 [shape = 'u8[16384]{0}', space=vmem, size = 0x4000, scoped, tag = 'input window, operand 1']
    #allocation5 [shape = 's32[2]{0}', space=sflag, size = 0x8, scoped, tag = 'scoped memory for tpu_custom_call.1']
    #allocation6 [shape = 's32[2]{0}', space=sflag, size = 0x8, scoped, tag = 'scoped memory for tpu_custom_call.1']
    #allocation7 [shape = 'u8[16384]{0}', space=vmem, size = 0x4000, scoped, tag = 'input window, operand 2']
    #allocation8 [shape = 's32[2]{0}', space=sflag, size = 0x8, scoped, tag = 'scoped memory for tpu_custom_call.1']
    #allocation9 [shape = 'u8[65536]{0}', space=vmem, size = 0x10000, scoped, tag = 'input window, operand 3, single buffered']
    #allocation10 [shape = 'u8[65536]{0}', space=vmem, size = 0x10000, scoped, tag = 'input window, operand 5, single buffered']
    #allocation11 [shape = 's32[1]{0}', space=sflag, size = 0x4, scoped, tag = 'scoped memory for tpu_custom_call.1']
    #allocation12 [shape = 'u8[65536]{0}', space=vmem, size = 0x10000, scoped, tag = 'input window, operand 7, single buffered']
    #allocation13 [shape = 'u8[65536]{0}', space=vmem, size = 0x10000, scoped, tag = 'input window, operand 9, single buffered']
    #allocation14 [shape = 's32[1]{0}', space=sflag, size = 0x4, scoped, tag = 'scoped memory for tpu_custom_call.1']
    #allocation15 [shape = 'u8[16384]{0}', space=vmem, size = 0x4000, scoped, tag = 'output window, operand 0']
    #allocation16 [shape = 'u8[16384]{0}', space=vmem, size = 0x4000, scoped, tag = 'output window, operand 1']
    #allocation17 [shape = 's32[2]{0}', space=sflag, size = 0x8, scoped, tag = 'scoped memory for tpu_custom_call.1']
    %26 = vsyncpa [#allocation5], 0
    %s27 = scalar_lea.sflag [#allocation5], 1
    %28 = vsyncpa %s27, 0
    %29 = vsyncpa [#allocation8], 0
    %s30 = scalar_lea.sflag [#allocation8], 1
    %31 = vsyncpa %s30, 0
    %32 = vsyncpa [#allocation11], 0
    %33 = vsyncpa [#allocation14], 0
    %34 = vsyncpa [#allocation6], 0
    %s35 = scalar_lea.sflag [#allocation6], 1
    %36 = vsyncpa %s35, 0
    %37 = vsyncpa [#allocation17], 0
    %s38 = scalar_lea.sflag [#allocation17], 1
    %39 = vsyncpa %s38, 0
    loop: start=0, step=1, limit=4
    $region2: #{tpu_custom_call.1} parent=1 // loop_pre_header
      _
    $region3: #{tpu_custom_call.1} parent=1 // loop_header
      %s41 = sphi 0, %s45
      %p42 = scmp.ge.s32.totalorder %s41, 4
      %s51 = sphi 0, %s53
      %s54 = sphi 0, %s51
      %s55 = sphi 0, %s54
      %s71 = sphi 0, %s55
      %s77 = sphi 0, %s79
      %s80 = sphi 0, %s77
      %s81 = sphi 0, %s80
      %s97 = sphi 0, %s81
      %s101 = sphi 0, %s101
      %s103 = sphi 0, %s101
      %s104 = sphi 0, %s103
      %s118 = sphi 0, %s104
      %s122 = sphi 0, %s122
      %s124 = sphi 0, %s122
      %s125 = sphi 0, %s124
      %s139 = sphi 0, %s125
      %s143 = sphi 0, %s143
      %s145 = sphi 0, %s143
      %s146 = sphi 0, %s145
      %s160 = sphi 0, %s146
      %s164 = sphi 0, %s164
      %s166 = sphi 0, %s164
      %s167 = sphi 0, %s166
      %s181 = sphi 0, %s167
      %s185 = sphi 0, %s185
      %s187 = sphi 0, %s185
      %s188 = sphi 0, %s187
      %s202 = sphi 0, %s188
      %s206 = sphi 0, %s206
      %s208 = sphi 0, %s206
      %s209 = sphi 0, %s208
      %s223 = sphi 0, %s209
      %s227 = sphi 0, %s227
      %s229 = sphi 0, %s227
      %s230 = sphi 0, %s229
      %s244 = sphi 0, %s230
      %s248 = sphi 0, %s248
      %s250 = sphi 0, %s248
      %s251 = sphi 0, %s250
      %s265 = sphi 0, %s251
      %s271 = sphi 0, %s273
      %s274 = sphi 0, %s271
      %s275 = sphi 0, %s274
      %s291 = sphi 0, %s275
      %s297 = sphi 0, %s299
      %s300 = sphi 0, %s297
      %s301 = sphi 0, %s300
      %s317 = sphi 0, %s301
    $region4: #{tpu_custom_call.1} parent=1 // loop_header_branch
      %44 = sbr.rel (%p42) target = $region8
    $region5: #{tpu_custom_call.1} parent=1 // loop_body
      %s46 = ssub.s32 %s41, 1
      %s47 = ssub.s32 %s41, 2
      %s48 = sadd.s32 %s41, 1
      %s49 = ssub.s32 %s41, %s48
      %p50 = scmp.eq.s32.totalorder %s49, 0
      %s52 = sadd.s32 %s51, 1
      %s53 = scalar_select %p50, %s51, %s52
      %p56 = pneg %p50
      %p57 = scmp.eq.s32.totalorder %s41, 1
      %p58 = por %p56, %p57
      %p59 = scmp.ne.s32.totalorder %s51, %s54
      %p60 = scmp.eq.s32.totalorder %s41, 0
      %p61 = por %p59, %p60
      %p62 = scmp.ne.s32.totalorder %s51, %s54
      %p63 = scmp.eq.s32.totalorder %s46, 1
      %p64 = por %p62, %p63
      %p65 = scmp.ne.s32.totalorder %s54, %s55
      %p66 = scmp.eq.s32.totalorder %s46, 0
      %p67 = por %p65, %p66
      %p68 = scmp.ne.s32.totalorder %s54, %s55
      %p69 = scmp.eq.s32.totalorder %s47, 1
      %p70 = por %p68, %p69
      %p72 = scmp.ne.s32.totalorder %s55, %s71
      %p73 = scmp.eq.s32.totalorder %s47, 0
      %p74 = por %p72, %p73
      %s75 = ssub.s32 %s41, %s48
      %p76 = scmp.eq.s32.totalorder %s75, 0
      %s78 = sadd.s32 %s77, 1
      %s79 = scalar_select %p76, %s77, %s78
      %p82 = pneg %p76
      %p83 = scmp.eq.s32.totalorder %s41, 1
      %p84 = por %p82, %p83
      %p85 = scmp.ne.s32.totalorder %s77, %s80
      %p86 = scmp.eq.s32.totalorder %s41, 0
      %p87 = por %p85, %p86
      %p88 = scmp.ne.s32.totalorder %s77, %s80
      %p89 = scmp.eq.s32.totalorder %s46, 1
      %p90 = por %p88, %p89
      %p91 = scmp.ne.s32.totalorder %s80, %s81
      %p92 = scmp.eq.s32.totalorder %s46, 0
      %p93 = por %p91, %p92
      %p94 = scmp.ne.s32.totalorder %s80, %s81
      %p95 = scmp.eq.s32.totalorder %s47, 1
      %p96 = por %p94, %p95
      %p98 = scmp.ne.s32.totalorder %s81, %s97
      %p99 = scmp.eq.s32.totalorder %s47, 0
      %p100 = por %p98, %p99
      %s102 = sadd.s32 %s101, 1
      %p105 = scmp.eq.s32.totalorder %s41, 1
      %p106 = scmp.ne.s32.totalorder %s101, %s103
      %p107 = scmp.eq.s32.totalorder %s41, 0
      %p108 = por %p106, %p107
      %p109 = scmp.ne.s32.totalorder %s101, %s103
      %p110 = scmp.eq.s32.totalorder %s46, 1
      %p111 = por %p109, %p110
      %p112 = scmp.ne.s32.totalorder %s103, %s104
      %p113 = scmp.eq.s32.totalorder %s46, 0
      %p114 = por %p112, %p113
      %p115 = scmp.ne.s32.totalorder %s103, %s104
      %p116 = scmp.eq.s32.totalorder %s47, 1
      %p117 = por %p115, %p116
      %p119 = scmp.ne.s32.totalorder %s104, %s118
      %p120 = scmp.eq.s32.totalorder %s47, 0
      %p121 = por %p119, %p120
      %s123 = sadd.s32 %s122, 1
      %p126 = scmp.eq.s32.totalorder %s41, 1
      %p127 = scmp.ne.s32.totalorder %s122, %s124
      %p128 = scmp.eq.s32.totalorder %s41, 0
      %p129 = por %p127, %p128
      %p130 = scmp.ne.s32.totalorder %s122, %s124
      %p131 = scmp.eq.s32.totalorder %s46, 1
      %p132 = por %p130, %p131
      %p133 = scmp.ne.s32.totalorder %s124, %s125
      %p134 = scmp.eq.s32.totalorder %s46, 0
      %p135 = por %p133, %p134
      %p136 = scmp.ne.s32.totalorder %s124, %s125
      %p137 = scmp.eq.s32.totalorder %s47, 1
      %p138 = por %p136, %p137
      %p140 = scmp.ne.s32.totalorder %s125, %s139
      %p141 = scmp.eq.s32.totalorder %s47, 0
      %p142 = por %p140, %p141
      %s144 = sadd.s32 %s143, 1
      %p147 = scmp.eq.s32.totalorder %s41, 1
      %p148 = scmp.ne.s32.totalorder %s143, %s145
      %p149 = scmp.eq.s32.totalorder %s41, 0
      %p150 = por %p148, %p149
      %p151 = scmp.ne.s32.totalorder %s143, %s145
      %p152 = scmp.eq.s32.totalorder %s46, 1
      %p153 = por %p151, %p152
      %p154 = scmp.ne.s32.totalorder %s145, %s146
      %p155 = scmp.eq.s32.totalorder %s46, 0
      %p156 = por %p154, %p155
      %p157 = scmp.ne.s32.totalorder %s145, %s146
      %p158 = scmp.eq.s32.totalorder %s47, 1
      %p159 = por %p157, %p158
      %p161 = scmp.ne.s32.totalorder %s146, %s160
      %p162 = scmp.eq.s32.totalorder %s47, 0
      %p163 = por %p161, %p162
      %s165 = sadd.s32 %s164, 1
      %p168 = scmp.eq.s32.totalorder %s41, 1
      %p169 = scmp.ne.s32.totalorder %s164, %s166
      %p170 = scmp.eq.s32.totalorder %s41, 0
      %p171 = por %p169, %p170
      %p172 = scmp.ne.s32.totalorder %s164, %s166
      %p173 = scmp.eq.s32.totalorder %s46, 1
      %p174 = por %p172, %p173
      %p175 = scmp.ne.s32.totalorder %s166, %s167
      %p176 = scmp.eq.s32.totalorder %s46, 0
      %p177 = por %p175, %p176
      %p178 = scmp.ne.s32.totalorder %s166, %s167
      %p179 = scmp.eq.s32.totalorder %s47, 1
      %p180 = por %p178, %p179
      %p182 = scmp.ne.s32.totalorder %s167, %s181
      %p183 = scmp.eq.s32.totalorder %s47, 0
      %p184 = por %p182, %p183
      %s186 = sadd.s32 %s185, 1
      %p189 = scmp.eq.s32.totalorder %s41, 1
      %p190 = scmp.ne.s32.totalorder %s185, %s187
      %p191 = scmp.eq.s32.totalorder %s41, 0
      %p192 = por %p190, %p191
      %p193 = scmp.ne.s32.totalorder %s185, %s187
      %p194 = scmp.eq.s32.totalorder %s46, 1
      %p195 = por %p193, %p194
      %p196 = scmp.ne.s32.totalorder %s187, %s188
      %p197 = scmp.eq.s32.totalorder %s46, 0
      %p198 = por %p196, %p197
      %p199 = scmp.ne.s32.totalorder %s187, %s188
      %p200 = scmp.eq.s32.totalorder %s47, 1
      %p201 = por %p199, %p200
      %p203 = scmp.ne.s32.totalorder %s188, %s202
      %p204 = scmp.eq.s32.totalorder %s47, 0
      %p205 = por %p203, %p204
      %s207 = sadd.s32 %s206, 1
      %p210 = scmp.eq.s32.totalorder %s41, 1
      %p211 = scmp.ne.s32.totalorder %s206, %s208
      %p212 = scmp.eq.s32.totalorder %s41, 0
      %p213 = por %p211, %p212
      %p214 = scmp.ne.s32.totalorder %s206, %s208
      %p215 = scmp.eq.s32.totalorder %s46, 1
      %p216 = por %p214, %p215
      %p217 = scmp.ne.s32.totalorder %s208, %s209
      %p218 = scmp.eq.s32.totalorder %s46, 0
      %p219 = por %p217, %p218
      %p220 = scmp.ne.s32.totalorder %s208, %s209
      %p221 = scmp.eq.s32.totalorder %s47, 1
      %p222 = por %p220, %p221
      %p224 = scmp.ne.s32.totalorder %s209, %s223
      %p225 = scmp.eq.s32.totalorder %s47, 0
      %p226 = por %p224, %p225
      %s228 = sadd.s32 %s227, 1
      %p231 = scmp.eq.s32.totalorder %s41, 1
      %p232 = scmp.ne.s32.totalorder %s227, %s229
      %p233 = scmp.eq.s32.totalorder %s41, 0
      %p234 = por %p232, %p233
      %p235 = scmp.ne.s32.totalorder %s227, %s229
      %p236 = scmp.eq.s32.totalorder %s46, 1
      %p237 = por %p235, %p236
      %p238 = scmp.ne.s32.totalorder %s229, %s230
      %p239 = scmp.eq.s32.totalorder %s46, 0
      %p240 = por %p238, %p239
      %p241 = scmp.ne.s32.totalorder %s229, %s230
      %p242 = scmp.eq.s32.totalorder %s47, 1
      %p243 = por %p241, %p242
      %p245 = scmp.ne.s32.totalorder %s230, %s244
      %p246 = scmp.eq.s32.totalorder %s47, 0
      %p247 = por %p245, %p246
      %s249 = sadd.s32 %s248, 1
      %p252 = scmp.eq.s32.totalorder %s41, 1
      %p253 = scmp.ne.s32.totalorder %s248, %s250
      %p254 = scmp.eq.s32.totalorder %s41, 0
      %p255 = por %p253, %p254
      %p256 = scmp.ne.s32.totalorder %s248, %s250
      %p257 = scmp.eq.s32.totalorder %s46, 1
      %p258 = por %p256, %p257
      %p259 = scmp.ne.s32.totalorder %s250, %s251
      %p260 = scmp.eq.s32.totalorder %s46, 0
      %p261 = por %p259, %p260
      %p262 = scmp.ne.s32.totalorder %s250, %s251
      %p263 = scmp.eq.s32.totalorder %s47, 1
      %p264 = por %p262, %p263
      %p266 = scmp.ne.s32.totalorder %s251, %s265
      %p267 = scmp.eq.s32.totalorder %s47, 0
      %p268 = por %p266, %p267
      %s269 = ssub.s32 %s41, %s48
      %p270 = scmp.eq.s32.totalorder %s269, 0
      %s272 = sadd.s32 %s271, 1
      %s273 = scalar_select %p270, %s271, %s272
      %p276 = pneg %p270
      %p277 = scmp.eq.s32.totalorder %s41, 1
      %p278 = por %p276, %p277
      %p279 = scmp.ne.s32.totalorder %s271, %s274
      %p280 = scmp.eq.s32.totalorder %s41, 0
      %p281 = por %p279, %p280
      %p282 = scmp.ne.s32.totalorder %s271, %s274
      %p283 = scmp.eq.s32.totalorder %s46, 1
      %p284 = por %p282, %p283
      %p285 = scmp.ne.s32.totalorder %s274, %s275
      %p286 = scmp.eq.s32.totalorder %s46, 0
      %p287 = por %p285, %p286
      %p288 = scmp.ne.s32.totalorder %s274, %s275
      %p289 = scmp.eq.s32.totalorder %s47, 1
      %p290 = por %p288, %p289
      %p292 = scmp.ne.s32.totalorder %s275, %s291
      %p293 = scmp.eq.s32.totalorder %s47, 0
      %p294 = por %p292, %p293
      %s295 = ssub.s32 %s41, %s48
      %p296 = scmp.eq.s32.totalorder %s295, 0
      %s298 = sadd.s32 %s297, 1
      %s299 = scalar_select %p296, %s297, %s298
      %p302 = pneg %p296
      %p303 = scmp.eq.s32.totalorder %s41, 1
      %p304 = por %p302, %p303
      %p305 = scmp.ne.s32.totalorder %s297, %s300
      %p306 = scmp.eq.s32.totalorder %s41, 0
      %p307 = por %p305, %p306
      %p308 = scmp.ne.s32.totalorder %s297, %s300
      %p309 = scmp.eq.s32.totalorder %s46, 1
      %p310 = por %p308, %p309
      %p311 = scmp.ne.s32.totalorder %s300, %s301
      %p312 = scmp.eq.s32.totalorder %s46, 0
      %p313 = por %p311, %p312
      %p314 = scmp.ne.s32.totalorder %s300, %s301
      %p315 = scmp.eq.s32.totalorder %s47, 1
      %p316 = por %p314, %p315
      %p318 = scmp.ne.s32.totalorder %s301, %s317
      %p319 = scmp.eq.s32.totalorder %s47, 0
      %p320 = por %p318, %p319
      %p321 = scmp.le.s32.totalorder 1, %s41
      %p322 = scmp.lt.s32.totalorder %s41, 3
      %p323 = pnand %p321, %p322
      %p324 = pneg %p323
      // Predicated region
      $region9: #{tpu_custom_call.1} parent=5 // pred_check
        _
      $region10: #{tpu_custom_call.1} parent=5 // pred_check_branch
        %326 = sbr.rel (%p323) target = $region12
      $region11: #{tpu_custom_call.1} parent=5 // pred_region
        %s327 = ssub.s32 %s41, 1
        // Predicated region
        $region13: #{tpu_custom_call.1} parent=11 // pred_check
          %p328 = pneg %p114
        $region14: #{tpu_custom_call.1} parent=11 // pred_check_branch
          %330 = sbr.rel (%p328) target = $region16
        $region15: #{tpu_custom_call.1} parent=11 // pred_region
          %332 = vsyncadd [#allocation8], 0
          %s333 = sshll.u32 %s3, 4
          %s334 = int_to_ptr.hbm [resolvable:$true] %s333
          %s335 = sshll.u32 [#allocation9], 4
          %s336 = int_to_ptr.vmem [resolvable:$true] %s335
          %341 = dma.hbm_to_vmem [thread:$0]  %s334, 2048, %s336, [#allocation8], 128, 128, 8
        $region16: #{tpu_custom_call.1} parent=11 // pred_fallthru
          _
        // Predicated region
        $region17: #{tpu_custom_call.1} parent=11 // pred_check
          %p342 = pneg %p135
        $region18: #{tpu_custom_call.1} parent=11 // pred_check_branch
          %344 = sbr.rel (%p342) target = $region20
        $region19: #{tpu_custom_call.1} parent=11 // pred_region
          _
        $region20: #{tpu_custom_call.1} parent=11 // pred_fallthru
          _
        // Predicated region
        $region21: #{tpu_custom_call.1} parent=11 // pred_check
          %p345 = pneg %p156
        $region22: #{tpu_custom_call.1} parent=11 // pred_check_branch
          %347 = sbr.rel (%p345) target = $region24
        $region23: #{tpu_custom_call.1} parent=11 // pred_region
          %349 = vsyncadd [#allocation11], 0
          %s350 = sshll.u32 %s5, 4
          %s351 = int_to_ptr.hbm [resolvable:$true] %s350
          %s352 = sshll.u32 [#allocation10], 4
          %s353 = int_to_ptr.vmem [resolvable:$true] %s352
          %358 = dma.hbm_to_vmem [thread:$0]  %s351, 2048, %s353, [#allocation11], 128, 128, 8
        $region24: #{tpu_custom_call.1} parent=11 // pred_fallthru
          _
        // Predicated region
        $region25: #{tpu_custom_call.1} parent=11 // pred_check
          %p359 = pneg %p177
        $region26: #{tpu_custom_call.1} parent=11 // pred_check_branch
          %361 = sbr.rel (%p359) target = $region28
        $region27: #{tpu_custom_call.1} parent=11 // pred_region
          _
        $region28: #{tpu_custom_call.1} parent=11 // pred_fallthru
          _
        // Predicated region
        $region29: #{tpu_custom_call.1} parent=11 // pred_check
          %p362 = pneg %p198
        $region30: #{tpu_custom_call.1} parent=11 // pred_check_branch
          %364 = sbr.rel (%p362) target = $region32
        $region31: #{tpu_custom_call.1} parent=11 // pred_region
          %366 = vsyncadd [#allocation11], 0
          %s367 = sshll.u32 %s7, 4
          %s368 = int_to_ptr.hbm [resolvable:$true] %s367
          %s369 = sshll.u32 [#allocation12], 4
          %s370 = int_to_ptr.vmem [resolvable:$true] %s369
          %375 = dma.hbm_to_vmem [thread:$0]  %s368, 2048, %s370, [#allocation11], 128, 128, 8
        $region32: #{tpu_custom_call.1} parent=11 // pred_fallthru
          _
        // Predicated region
        $region33: #{tpu_custom_call.1} parent=11 // pred_check
          %p376 = pneg %p219
        $region34: #{tpu_custom_call.1} parent=11 // pred_check_branch
          %378 = sbr.rel (%p376) target = $region36
        $region35: #{tpu_custom_call.1} parent=11 // pred_region
          _
        $region36: #{tpu_custom_call.1} parent=11 // pred_fallthru
          _
        // Predicated region
        $region37: #{tpu_custom_call.1} parent=11 // pred_check
          %p379 = pneg %p240
        $region38: #{tpu_custom_call.1} parent=11 // pred_check_branch
          %381 = sbr.rel (%p379) target = $region40
        $region39: #{tpu_custom_call.1} parent=11 // pred_region
          %383 = vsyncadd [#allocation14], 0
          %s384 = sshll.u32 %s9, 4
          %s385 = int_to_ptr.hbm [resolvable:$true] %s384
          %s386 = sshll.u32 [#allocation13], 4
          %s387 = int_to_ptr.vmem [resolvable:$true] %s386
          %392 = dma.hbm_to_vmem [thread:$0]  %s385, 2048, %s387, [#allocation14], 128, 128, 8
        $region40: #{tpu_custom_call.1} parent=11 // pred_fallthru
          _
        // Predicated region
        $region41: #{tpu_custom_call.1} parent=11 // pred_check
          %p393 = pneg %p261
        $region42: #{tpu_custom_call.1} parent=11 // pred_check_branch
          %395 = sbr.rel (%p393) target = $region44
        $region43: #{tpu_custom_call.1} parent=11 // pred_region
          _
        $region44: #{tpu_custom_call.1} parent=11 // pred_fallthru
          _
      $region12: #{tpu_custom_call.1} parent=5 // pred_fallthru
        _
      %p396 = scmp.lt.s32.totalorder %s41, 2
      // Predicated region
      $region45: #{tpu_custom_call.1} parent=5 // pred_check
        %p397 = pneg %p396
      $region46: #{tpu_custom_call.1} parent=5 // pred_check_branch
        %399 = sbr.rel (%p397) target = $region48
      $region47: #{tpu_custom_call.1} parent=5 // pred_region
        // Predicated region
        $region49: #{tpu_custom_call.1} parent=47 // pred_check
          %p400 = pneg %p61
        $region50: #{tpu_custom_call.1} parent=47 // pred_check_branch
          %402 = sbr.rel (%p400) target = $region52
        $region51: #{tpu_custom_call.1} parent=47 // pred_region
          %s403 = sand.u32 %s51, 1
          %s404 = scalar_lea.sflag [#allocation5], %s403
          %s405 = sand.u32 %s51, 1
          %s406 = smul.addr %s405, 16
          %s407 = scalar_lea.vmem [#allocation4], %s406
          %s408 = smul.u32 2, %s41
          %s409 = ssub.s32 3, %s408
          %p410 = scmp.lt.s32.totalorder %s409, 2
          %s411 = scalar_select %p410, %s409, 2
          %s412 = smul.u32 8, %s411
          %s413 = ssub.s32 16, %s412
          %s414 = sshll.u32 %s413, 4
          %415 = vsyncadd %s404, %s414
          %p416 = scmp.ne.s32.totalorder 0, %s412
          %s417 = smul.addr %s408, 8
          %s418 = scalar_lea.hbm %s1, %s417
          %s419 = smul.u32 8, %s411
          %s420 = sshll.u32 %s418, 4
          %s421 = int_to_ptr.hbm [resolvable:$true] %s420
          %s422 = sshll.u32 %s407, 4
          %s423 = int_to_ptr.vmem [resolvable:$true] %s422
          %s424 = sshll.u32 %s419, 4
          %428 = dma.hbm_to_vmem [thread:$0]  (%p416), %s421, %s424, %s423, %s404, 128, 128, 8
        $region52: #{tpu_custom_call.1} parent=47 // pred_fallthru
          _
        // Predicated region
        $region53: #{tpu_custom_call.1} parent=47 // pred_check
          %p429 = pneg %p87
        $region54: #{tpu_custom_call.1} parent=47 // pred_check_branch
          %431 = sbr.rel (%p429) target = $region56
        $region55: #{tpu_custom_call.1} parent=47 // pred_region
          %s432 = sand.u32 %s41, 1
          %s433 = scalar_lea.sflag [#allocation8], %s432
          %s434 = sand.u32 %s77, 1
          %s435 = smul.addr %s434, 16
          %s436 = scalar_lea.vmem [#allocation7], %s435
          %s437 = smul.u32 2, %s41
          %s438 = ssub.s32 3, %s437
          %p439 = scmp.lt.s32.totalorder %s438, 2
          %s440 = scalar_select %p439, %s438, 2
          %s441 = smul.u32 8, %s440
          %s442 = ssub.s32 16, %s441
          %s443 = sshll.u32 %s442, 4
          %444 = vsyncadd %s433, %s443
          %p445 = scmp.ne.s32.totalorder 0, %s441
          %s446 = smul.addr %s437, 8
          %s447 = scalar_lea.hbm %s2, %s446
          %s448 = smul.u32 8, %s440
          %s449 = sshll.u32 %s447, 4
          %s450 = int_to_ptr.hbm [resolvable:$true] %s449
          %s451 = sshll.u32 %s436, 4
          %s452 = int_to_ptr.vmem [resolvable:$true] %s451
          %s453 = sshll.u32 %s448, 4
          %457 = dma.hbm_to_vmem [thread:$0]  (%p445), %s450, %s453, %s452, %s433, 128, 128, 8
        $region56: #{tpu_custom_call.1} parent=47 // pred_fallthru
          _
      $region48: #{tpu_custom_call.1} parent=5 // pred_fallthru
        _
      %p458 = scmp.le.s32.totalorder 1, %s41
      %p459 = scmp.lt.s32.totalorder %s41, 3
      %p460 = pnand %p458, %p459
      %p461 = pneg %p460
      // Predicated region
      $region57: #{tpu_custom_call.1} parent=5 // pred_check
        _
      $region58: #{tpu_custom_call.1} parent=5 // pred_check_branch
        %463 = sbr.rel (%p460) target = $region60
      $region59: #{tpu_custom_call.1} parent=5 // pred_region
        %s464 = ssub.s32 %s41, 1
        %s465 = sand.u32 %s54, 1
        %s466 = scalar_lea.sflag [#allocation5], %s465
        %s467 = sand.u32 %s54, 1
        %s468 = smul.addr %s467, 16
        %s469 = scalar_lea.vmem [#allocation4], %s468
        // Predicated region
        $region61: #{tpu_custom_call.1} parent=59 // pred_check
          %p470 = pneg %p67
        $region62: #{tpu_custom_call.1} parent=59 // pred_check_branch
          %472 = sbr.rel (%p470) target = $region64
        $region63: #{tpu_custom_call.1} parent=59 // pred_region
          %474 = dma.done %s466, 256
        $region64: #{tpu_custom_call.1} parent=59 // pred_fallthru
          _
        %s475 = sand.u32 %s46, 1
        %s476 = scalar_lea.sflag [#allocation8], %s475
        %s477 = sand.u32 %s80, 1
        %s478 = smul.addr %s477, 16
        %s479 = scalar_lea.vmem [#allocation7], %s478
        // Predicated region
        $region65: #{tpu_custom_call.1} parent=59 // pred_check
          %p480 = pneg %p93
        $region66: #{tpu_custom_call.1} parent=59 // pred_check_branch
          %482 = sbr.rel (%p480) target = $region68
        $region67: #{tpu_custom_call.1} parent=59 // pred_region
          %484 = dma.done %s476, 256
        $region68: #{tpu_custom_call.1} parent=59 // pred_fallthru
          _
        // Predicated region
        $region69: #{tpu_custom_call.1} parent=59 // pred_check
          %p485 = pneg %p114
        $region70: #{tpu_custom_call.1} parent=59 // pred_check_branch
          %487 = sbr.rel (%p485) target = $region72
        $region71: #{tpu_custom_call.1} parent=59 // pred_region
          %489 = dma.done [#allocation8], 2048
        $region72: #{tpu_custom_call.1} parent=59 // pred_fallthru
          _
        // Predicated region
        $region73: #{tpu_custom_call.1} parent=59 // pred_check
          %p490 = pneg %p156
        $region74: #{tpu_custom_call.1} parent=59 // pred_check_branch
          %492 = sbr.rel (%p490) target = $region76
        $region75: #{tpu_custom_call.1} parent=59 // pred_region
          %494 = dma.done [#allocation11], 2048
        $region76: #{tpu_custom_call.1} parent=59 // pred_fallthru
          _
        // Predicated region
        $region77: #{tpu_custom_call.1} parent=59 // pred_check
          %p495 = pneg %p198
        $region78: #{tpu_custom_call.1} parent=59 // pred_check_branch
          %497 = sbr.rel (%p495) target = $region80
        $region79: #{tpu_custom_call.1} parent=59 // pred_region
          %499 = dma.done [#allocation11], 2048
        $region80: #{tpu_custom_call.1} parent=59 // pred_fallthru
          _
        // Predicated region
        $region81: #{tpu_custom_call.1} parent=59 // pred_check
          %p500 = pneg %p240
        $region82: #{tpu_custom_call.1} parent=59 // pred_check_branch
          %502 = sbr.rel (%p500) target = $region84
        $region83: #{tpu_custom_call.1} parent=59 // pred_region
          %504 = dma.done [#allocation14], 2048
        $region84: #{tpu_custom_call.1} parent=59 // pred_fallthru
          _
        %s505 = sand.u32 %s54, 1
        %s506 = scalar_lea.sflag [#allocation5], %s505
        %s507 = sand.u32 %s54, 1
        %s508 = smul.addr %s507, 16
        %s509 = scalar_lea.vmem [#allocation4], %s508
        %p510 = pneg %p67
        %p511 = pneg %p64
        %s512 = sand.u32 %s46, 1
        %s513 = scalar_lea.sflag [#allocation8], %s512
        %s514 = sand.u32 %s80, 1
        %s515 = smul.addr %s514, 16
        %s516 = scalar_lea.vmem [#allocation7], %s515
        %p517 = pneg %p93
        %p518 = pneg %p90
        %p519 = pneg %p114
        %p520 = pneg %p111
        %p521 = pneg %p135
        %p522 = pneg %p132
        %p523 = pneg %p156
        %p524 = pneg %p153
        %p525 = pneg %p177
        %p526 = pneg %p174
        %p527 = pneg %p198
        %p528 = pneg %p195
        %p529 = pneg %p219
        %p530 = pneg %p216
        %p531 = pneg %p240
        %p532 = pneg %p237
        %p533 = pneg %p261
        %p534 = pneg %p258
        %p535 = pneg %p287
        %p536 = pneg %p284
        %s537 = sand.u32 %s274, 1
        %s538 = scalar_lea.sflag [#allocation6], %s537
        %s539 = sand.u32 %s274, 1
        %s540 = smul.addr %s539, 16
        %s541 = scalar_lea.vmem [#allocation15], %s540
        %p542 = pneg %p313
        %p543 = pneg %p310
        %s544 = sand.u32 %s300, 1
        %s545 = scalar_lea.sflag [#allocation17], %s544
        %s546 = sand.u32 %s300, 1
        %s547 = smul.addr %s546, 16
        %s548 = scalar_lea.vmem [#allocation16], %s547
        %s549 = smul.u32 2, %s46
        %s550 = ssub.s32 3, %s549
        %p551 = scmp.lt.s32.totalorder %s550, 2
        %s552 = scalar_select %p551, %s550, 2
        %s553 = smul.u32 8, %s552
        %s554 = smul.u32 2, %s46
        %s555 = ssub.s32 3, %s554
        %p556 = scmp.lt.s32.totalorder %s555, 2
        %s557 = scalar_select %p556, %s555, 2
        %s558 = smul.u32 8, %s557
        %s559 = smul.u32 2, %s46
        %s560 = ssub.s32 3, %s559
        %p561 = scmp.lt.s32.totalorder %s560, 2
        %s562 = scalar_select %p561, %s560, 2
        %s563 = smul.u32 8, %s562
        %s564 = smul.u32 2, %s46
        %s565 = ssub.s32 3, %s564
        %p566 = scmp.lt.s32.totalorder %s565, 2
        %s567 = scalar_select %p566, %s565, 2
        %s568 = smul.u32 8, %s567
        %s569 = sld [smem:[#allocation3]]
        %s570 = sld [smem:[#allocation3 + $0x1]]
        %v571 = vld [vmem:[%s469] sm:$0xff]
        %v572 = vld [vmem:[%s469 + $0x8] sm:$0xff]
        %v573 = vld [vmem:[%s479] sm:$0xff]
        %v574 = vld [vmem:[%s479 + $0x8] sm:$0xff]
        %v575 = vld [vmem:[#allocation9] sm:$0xff]
        %v576 = vld [vmem:[#allocation9 + $0x8] sm:$0xff]
        %v577 = vld [vmem:[#allocation9 + $0x10] sm:$0xff]
        %v578 = vld [vmem:[#allocation9 + $0x18] sm:$0xff]
        %v579 = vld [vmem:[#allocation9 + $0x20] sm:$0xff]
        %v580 = vld [vmem:[#allocation9 + $0x28] sm:$0xff]
        %v581 = vld [vmem:[#allocation9 + $0x30] sm:$0xff]
        %v582 = vld [vmem:[#allocation9 + $0x38] sm:$0xff]
        %v583 = vld [vmem:[#allocation9 + $0x40] sm:$0xff]
        %v584 = vld [vmem:[#allocation9 + $0x48] sm:$0xff]
        %v585 = vld [vmem:[#allocation9 + $0x50] sm:$0xff]
        %v586 = vld [vmem:[#allocation9 + $0x58] sm:$0xff]
        %v587 = vld [vmem:[#allocation9 + $0x60] sm:$0xff]
        %v588 = vld [vmem:[#allocation9 + $0x68] sm:$0xff]
        %v589 = vld [vmem:[#allocation9 + $0x70] sm:$0xff]
        %v590 = vld [vmem:[#allocation9 + $0x78] sm:$0xff]
        %v591 = vld [vmem:[%s4] sm:$0x1]
        %v593 = vperm.slane %v591, 0
        %595 = vmatpush.msra.mxu0 %v590
        %596 = vmatpush.msra.mxu0 %v589
        %597 = vmatpush.msra.mxu0 %v588
        %598 = vmatpush.msra.mxu0 %v587
        %599 = vmatpush.msra.mxu0 %v586
        %600 = vmatpush.msra.mxu0 %v585
        %601 = vmatpush.msra.mxu0 %v584
        %602 = vmatpush.msra.mxu0 %v583
        %603 = vmatpush.msra.mxu0 %v582
        %604 = vmatpush.msra.mxu0 %v581
        %605 = vmatpush.msra.mxu0 %v580
        %606 = vmatpush.msra.mxu0 %v579
        %607 = vmatpush.msra.mxu0 %v578
        %608 = vmatpush.msra.mxu0 %v577
        %609 = vmatpush.msra.mxu0 %v576
        %610 = vmatpush.msra.mxu0 %v575
        %611 = vmatmul.f32.gmra.mxu0 %v573
        %v612 = vpop.f32.mrf.mxu0
        %v613 = vadd.f32 %v593, %v612
        %614 = vmatmul.f32.gmra.mxu0 %v574
        %v615 = vpop.f32.mrf.mxu0
        %v616 = vadd.f32 %v593, %v615
        %617 = vdwg.mxu0
        %v618 = vmul.f32 %v613, %v613
        %v619 = vmul.f32 %v616, %v616
        %v620 = vmul.f32 %v613, %v618
        %v621 = vmul.f32 %v616, %v619
        %v622 = vmul.f32 %v620, 0.044715
        %v623 = vmul.f32 %v621, 0.044715
        %v624 = vadd.f32 %v613, %v622
        %v625 = vadd.f32 %v616, %v623
        %v626 = vmul.f32 %v624, 0.7978846
        %v627 = vmul.f32 %v625, 0.7978846
        %v628 = vtanh.pop %v626
        %v629 = vtanh.pop %v627
        %v630 = vadd.f32 %v628, 1.0
        %v631 = vadd.f32 %v629, 1.0
        %v632 = vmul.f32 %v630, 0.5
        %v633 = vmul.f32 %v631, 0.5
        %v634 = vmul.f32 %v613, %v632
        %v635 = vmul.f32 %v616, %v633
        %v636 = vld [vmem:[#allocation10] sm:$0xff]
        %v637 = vld [vmem:[#allocation10 + $0x8] sm:$0xff]
        %v638 = vld [vmem:[#allocation10 + $0x10] sm:$0xff]
        %v639 = vld [vmem:[#allocation10 + $0x18] sm:$0xff]
        %v640 = vld [vmem:[#allocation10 + $0x20] sm:$0xff]
        %v641 = vld [vmem:[#allocation10 + $0x28] sm:$0xff]
        %v642 = vld [vmem:[#allocation10 + $0x30] sm:$0xff]
        %v643 = vld [vmem:[#allocation10 + $0x38] sm:$0xff]
        %v644 = vld [vmem:[#allocation10 + $0x40] sm:$0xff]
        %v645 = vld [vmem:[#allocation10 + $0x48] sm:$0xff]
        %v646 = vld [vmem:[#allocation10 + $0x50] sm:$0xff]
        %v647 = vld [vmem:[#allocation10 + $0x58] sm:$0xff]
        %v648 = vld [vmem:[#allocation10 + $0x60] sm:$0xff]
        %v649 = vld [vmem:[#allocation10 + $0x68] sm:$0xff]
        %v650 = vld [vmem:[#allocation10 + $0x70] sm:$0xff]
        %v651 = vld [vmem:[#allocation10 + $0x78] sm:$0xff]
        %v652 = vld [vmem:[%s6] sm:$0x1]
        %v654 = vperm.slane %v652, 0
        %656 = vmatpush.msra.mxu0 %v651
        %657 = vmatpush.msra.mxu0 %v650
        %658 = vmatpush.msra.mxu0 %v649
        %659 = vmatpush.msra.mxu0 %v648
        %660 = vmatpush.msra.mxu0 %v647
        %661 = vmatpush.msra.mxu0 %v646
        %662 = vmatpush.msra.mxu0 %v645
        %663 = vmatpush.msra.mxu0 %v644
        %664 = vmatpush.msra.mxu0 %v643
        %665 = vmatpush.msra.mxu0 %v642
        %666 = vmatpush.msra.mxu0 %v641
        %667 = vmatpush.msra.mxu0 %v640
        %668 = vmatpush.msra.mxu0 %v639
        %669 = vmatpush.msra.mxu0 %v638
        %670 = vmatpush.msra.mxu0 %v637
        %671 = vmatpush.msra.mxu0 %v636
        %672 = vmatmul.f32.gmra.mxu0 %v634
        %v673 = vpop.f32.mrf.mxu0
        %v674 = vadd.f32 %v654, %v673
        %675 = vmatmul.f32.gmra.mxu0 %v635
        %v676 = vpop.f32.mrf.mxu0
        %v677 = vadd.f32 %v654, %v676
        %678 = vdwg.mxu0
        %v679 = vstv %s569
        %v680 = vmul.f32 %v679, %v571
        %v681 = vmul.f32 %v679, %v572
        %v682 = vadd.f32 %v680, %v674
        %v683 = vadd.f32 %v681, %v677
        %v684 = vld [vmem:[#allocation12] sm:$0xff]
        %v685 = vld [vmem:[#allocation12 + $0x8] sm:$0xff]
        %v686 = vld [vmem:[#allocation12 + $0x10] sm:$0xff]
        %v687 = vld [vmem:[#allocation12 + $0x18] sm:$0xff]
        %v688 = vld [vmem:[#allocation12 + $0x20] sm:$0xff]
        %v689 = vld [vmem:[#allocation12 + $0x28] sm:$0xff]
        %v690 = vld [vmem:[#allocation12 + $0x30] sm:$0xff]
        %v691 = vld [vmem:[#allocation12 + $0x38] sm:$0xff]
        %v692 = vld [vmem:[#allocation12 + $0x40] sm:$0xff]
        %v693 = vld [vmem:[#allocation12 + $0x48] sm:$0xff]
        %v694 = vld [vmem:[#allocation12 + $0x50] sm:$0xff]
        %v695 = vld [vmem:[#allocation12 + $0x58] sm:$0xff]
        %v696 = vld [vmem:[#allocation12 + $0x60] sm:$0xff]
        %v697 = vld [vmem:[#allocation12 + $0x68] sm:$0xff]
        %v698 = vld [vmem:[#allocation12 + $0x70] sm:$0xff]
        %v699 = vld [vmem:[#allocation12 + $0x78] sm:$0xff]
        %v700 = vld [vmem:[%s8] sm:$0x1]
        %v702 = vperm.slane %v700, 0
        %704 = vmatpush.msra.mxu0 %v699
        %705 = vmatpush.msra.mxu0 %v698
        %706 = vmatpush.msra.mxu0 %v697
        %707 = vmatpush.msra.mxu0 %v696
        %708 = vmatpush.msra.mxu0 %v695
        %709 = vmatpush.msra.mxu0 %v694
        %710 = vmatpush.msra.mxu0 %v693
        %711 = vmatpush.msra.mxu0 %v692
        %712 = vmatpush.msra.mxu0 %v691
        %713 = vmatpush.msra.mxu0 %v690
        %714 = vmatpush.msra.mxu0 %v689
        %715 = vmatpush.msra.mxu0 %v688
        %716 = vmatpush.msra.mxu0 %v687
        %717 = vmatpush.msra.mxu0 %v686
        %718 = vmatpush.msra.mxu0 %v685
        %719 = vmatpush.msra.mxu0 %v684
        %720 = vmatmul.f32.gmra.mxu0 %v682
        %v721 = vpop.f32.mrf.mxu0
        %v722 = vadd.f32 %v702, %v721
        %723 = vmatmul.f32.gmra.mxu0 %v683
        %v724 = vpop.f32.mrf.mxu0
        %v725 = vadd.f32 %v702, %v724
        %726 = vdwg.mxu0
        %v727 = vmul.f32 %v722, %v722
        %v728 = vmul.f32 %v725, %v725
        %v729 = vmul.f32 %v722, %v727
        %v730 = vmul.f32 %v725, %v728
        %v731 = vmul.f32 %v729, 0.044715
        %v732 = vmul.f32 %v730, 0.044715
        %v733 = vadd.f32 %v722, %v731
        %v734 = vadd.f32 %v725, %v732
        %v735 = vmul.f32 %v733, 0.7978846
        %v736 = vmul.f32 %v734, 0.7978846
        %v737 = vtanh.pop %v735
        %v738 = vtanh.pop %v736
        %v739 = vadd.f32 %v737, 1.0
        %v740 = vadd.f32 %v738, 1.0
        %v741 = vmul.f32 %v739, 0.5
        %v742 = vmul.f32 %v740, 0.5
        %v743 = vmul.f32 %v722, %v741
        %v744 = vmul.f32 %v725, %v742
        %v745 = vld [vmem:[#allocation13] sm:$0xff]
        %v746 = vld [vmem:[#allocation13 + $0x8] sm:$0xff]
        %v747 = vld [vmem:[#allocation13 + $0x10] sm:$0xff]
        %v748 = vld [vmem:[#allocation13 + $0x18] sm:$0xff]
        %v749 = vld [vmem:[#allocation13 + $0x20] sm:$0xff]
        %v750 = vld [vmem:[#allocation13 + $0x28] sm:$0xff]
        %v751 = vld [vmem:[#allocation13 + $0x30] sm:$0xff]
        %v752 = vld [vmem:[#allocation13 + $0x38] sm:$0xff]
        %v753 = vld [vmem:[#allocation13 + $0x40] sm:$0xff]
        %v754 = vld [vmem:[#allocation13 + $0x48] sm:$0xff]
        %v755 = vld [vmem:[#allocation13 + $0x50] sm:$0xff]
        %v756 = vld [vmem:[#allocation13 + $0x58] sm:$0xff]
        %v757 = vld [vmem:[#allocation13 + $0x60] sm:$0xff]
        %v758 = vld [vmem:[#allocation13 + $0x68] sm:$0xff]
        %v759 = vld [vmem:[#allocation13 + $0x70] sm:$0xff]
        %v760 = vld [vmem:[#allocation13 + $0x78] sm:$0xff]
        %v761 = vld [vmem:[%s10] sm:$0x1]
        %v763 = vperm.slane %v761, 0
        %765 = vmatpush.msra.mxu0 %v760
        %766 = vmatpush.msra.mxu0 %v759
        %767 = vmatpush.msra.mxu0 %v758
        %768 = vmatpush.msra.mxu0 %v757
        %769 = vmatpush.msra.mxu0 %v756
        %770 = vmatpush.msra.mxu0 %v755
        %771 = vmatpush.msra.mxu0 %v754
        %772 = vmatpush.msra.mxu0 %v753
        %773 = vmatpush.msra.mxu0 %v752
        %774 = vmatpush.msra.mxu0 %v751
        %775 = vmatpush.msra.mxu0 %v750
        %776 = vmatpush.msra.mxu0 %v749
        %777 = vmatpush.msra.mxu0 %v748
        %778 = vmatpush.msra.mxu0 %v747
        %779 = vmatpush.msra.mxu0 %v746
        %780 = vmatpush.msra.mxu0 %v745
        %781 = vmatmul.f32.gmra.mxu0 %v743
        %v782 = vpop.f32.mrf.mxu0
        %v783 = vadd.f32 %v763, %v782
        %784 = vmatmul.f32.gmra.mxu0 %v744
        %v785 = vpop.f32.mrf.mxu0
        %v786 = vadd.f32 %v763, %v785
        %787 = vdwg.mxu0
        %v788 = vstv %s570
        %v789 = vmul.f32 %v788, %v573
        %v790 = vmul.f32 %v788, %v574
        %v791 = vadd.f32 %v789, %v783
        %v792 = vadd.f32 %v790, %v786
        %793 = vst [vmem:[%s541] sm:$0xff] %v682
        %794 = vst [vmem:[%s541 + $0x8] sm:$0xff] %v683
        %795 = vst [vmem:[%s548] sm:$0xff] %v791
        %796 = vst [vmem:[%s548 + $0x8] sm:$0xff] %v792
        %s797 = sand.u32 %s274, 1
        %s798 = scalar_lea.sflag [#allocation6], %s797
        %s799 = sand.u32 %s274, 1
        %s800 = smul.addr %s799, 16
        %s801 = scalar_lea.vmem [#allocation15], %s800
        %s802 = sand.u32 %s300, 1
        %s803 = scalar_lea.sflag [#allocation17], %s802
        %s804 = sand.u32 %s300, 1
        %s805 = smul.addr %s804, 16
        %s806 = scalar_lea.vmem [#allocation16], %s805
        // Predicated region
        $region85: #{tpu_custom_call.1} parent=59 // pred_check
          %p807 = pneg %p284
        $region86: #{tpu_custom_call.1} parent=59 // pred_check_branch
          %809 = sbr.rel (%p807) target = $region88
        $region87: #{tpu_custom_call.1} parent=59 // pred_region
          %s810 = smul.u32 2, %s46
          %s811 = ssub.s32 3, %s810
          %p812 = scmp.lt.s32.totalorder %s811, 2
          %s813 = scalar_select %p812, %s811, 2
          %s814 = smul.u32 8, %s813
          %s815 = ssub.s32 16, %s814
          %s816 = sshll.u32 %s815, 4
          %817 = vsyncadd %s798, %s816
          %p818 = scmp.ne.s32.totalorder 0, %s814
          %s819 = smul.addr %s810, 8
          %s820 = scalar_lea.hbm %s11, %s819
          %s821 = smul.u32 8, %s813
          %s822 = sshll.u32 %s801, 4
          %s823 = int_to_ptr.vmem [resolvable:$true] %s822
          %s824 = sshll.u32 %s820, 4
          %s825 = int_to_ptr.hbm [resolvable:$true] %s824
          %s826 = sshll.u32 %s821, 4
          %830 = dma.vmem_to_hbm [thread:$0]  (%p818), %s823, %s826, %s825, %s798, 128, 128, 8
        $region88: #{tpu_custom_call.1} parent=59 // pred_fallthru
          _
        // Predicated region
        $region89: #{tpu_custom_call.1} parent=59 // pred_check
          %p831 = pneg %p310
        $region90: #{tpu_custom_call.1} parent=59 // pred_check_branch
          %833 = sbr.rel (%p831) target = $region92
        $region91: #{tpu_custom_call.1} parent=59 // pred_region
          %s834 = smul.u32 2, %s46
          %s835 = ssub.s32 3, %s834
          %p836 = scmp.lt.s32.totalorder %s835, 2
          %s837 = scalar_select %p836, %s835, 2
          %s838 = smul.u32 8, %s837
          %s839 = ssub.s32 16, %s838
          %s840 = sshll.u32 %s839, 4
          %841 = vsyncadd %s803, %s840
          %p842 = scmp.ne.s32.totalorder 0, %s838
          %s843 = smul.addr %s834, 8
          %s844 = scalar_lea.hbm %s12, %s843
          %s845 = smul.u32 8, %s837
          %s846 = sshll.u32 %s806, 4
          %s847 = int_to_ptr.vmem [resolvable:$true] %s846
          %s848 = sshll.u32 %s844, 4
          %s849 = int_to_ptr.hbm [resolvable:$true] %s848
          %s850 = sshll.u32 %s845, 4
          %854 = dma.vmem_to_hbm [thread:$0]  (%p842), %s847, %s850, %s849, %s803, 128, 128, 8
        $region92: #{tpu_custom_call.1} parent=59 // pred_fallthru
          _
      $region60: #{tpu_custom_call.1} parent=5 // pred_fallthru
        _
      %p855 = scmp.le.s32.totalorder 2, %s41
      // Predicated region
      $region93: #{tpu_custom_call.1} parent=5 // pred_check
        %p856 = pneg %p855
      $region94: #{tpu_custom_call.1} parent=5 // pred_check_branch
        %858 = sbr.rel (%p856) target = $region96
      $region95: #{tpu_custom_call.1} parent=5 // pred_region
        %s859 = ssub.s32 %s41, 2
        // Predicated region
        $region97: #{tpu_custom_call.1} parent=95 // pred_check
          %p860 = pneg %p290
        $region98: #{tpu_custom_call.1} parent=95 // pred_check_branch
          %862 = sbr.rel (%p860) target = $region100
        $region99: #{tpu_custom_call.1} parent=95 // pred_region
          %s863 = sand.u32 %s275, 1
          %s864 = scalar_lea.sflag [#allocation6], %s863
          %s865 = sand.u32 %s275, 1
          %s866 = smul.addr %s865, 16
          %s867 = scalar_lea.vmem [#allocation15], %s866
          %869 = dma.done %s864, 256
        $region100: #{tpu_custom_call.1} parent=95 // pred_fallthru
          _
        // Predicated region
        $region101: #{tpu_custom_call.1} parent=95 // pred_check
          %p870 = pneg %p316
        $region102: #{tpu_custom_call.1} parent=95 // pred_check_branch
          %872 = sbr.rel (%p870) target = $region104
        $region103: #{tpu_custom_call.1} parent=95 // pred_region
          %s873 = sand.u32 %s301, 1
          %s874 = scalar_lea.sflag [#allocation17], %s873
          %s875 = sand.u32 %s301, 1
          %s876 = smul.addr %s875, 16
          %s877 = scalar_lea.vmem [#allocation16], %s876
          %879 = dma.done %s874, 256
        $region104: #{tpu_custom_call.1} parent=95 // pred_fallthru
          _
      $region96: #{tpu_custom_call.1} parent=5 // pred_fallthru
        _
    $region6: #{tpu_custom_call.1} parent=1 // loop_footer
      %s45 = sadd.s32 1, %s41
    $region7: #{tpu_custom_call.1} parent=1 // loop_footer_branch
      %40 = sbr.rel target = $region3
    $region8: #{tpu_custom_call.1} parent=1 // loop_exit
      _
    %880 = vsyncpa [#allocation5], 1
    %s881 = scalar_lea.sflag [#allocation5], 1
    %882 = vsyncpa %s881, 1
    %883 = vsyncpa [#allocation8], 1
    %s884 = scalar_lea.sflag [#allocation8], 1
    %885 = vsyncpa %s884, 1
    %886 = vsyncpa [#allocation11], 1
    %887 = vsyncpa [#allocation14], 1
    %888 = vsyncpa [#allocation6], 1
    %s889 = scalar_lea.sflag [#allocation6], 1
    %890 = vsyncpa %s889, 1
    %891 = vsyncpa [#allocation17], 1
    %s892 = scalar_lea.sflag [#allocation17], 1
    %893 = vsyncpa %s892, 1

</llo_original>
